<compile_context>
chip_gen: v6e
topology: v6e:2x2x1
jax: 0.10.0
libtpu: 0.0.40
codegen_flags: <defaults>
</compile_context>

<pallas_src>
import math

import jax
import jax.numpy as jnp
from jax import lax
from jax.experimental import pallas as pl
from jax.experimental.pallas import tpu as pltpu


def _round_up(a: int, m: int) -> int:
    return ((a + m - 1) // m) * m


def _vmem_limit_bytes() -> int:
    # Generation-aware scoped-VMEM limit: ~3/4 of physical, capped at 96 MiB.
    try:
        cap = int(pltpu.get_tpu_info().vmem_capacity_bytes)
    except Exception:
        cap = 64 * 1024 * 1024  # conservative fallback (v7x per-TC VMEM)
    return min((cap * 3) // 4, 96 * 1024 * 1024)


def _qkv_matmul_kernel(x_ref, w_ref, b_ref, o_ref, acc_ref):
    # x_ref: (tm, tk); w_ref: (tn, tk) [native nn.Linear layout]; b_ref: (1, tn)
    # o_ref: (tm, tn); acc_ref: (tm, tn) f32 scratch.
    @pl.when(pl.program_id(2) == 0)
    def _():
        # Init accumulator with the broadcast bias -> no separate add at the end.
        acc_ref[...] = jnp.broadcast_to(
            b_ref[...].astype(jnp.float32), acc_ref.shape
        )

    # Contract x's last dim against w's last dim (y = x @ w^T) on the MXU.
    acc_ref[...] += lax.dot_general(
        x_ref[...],
        w_ref[...],
        dimension_numbers=(((1,), (1,)), ((), ())),
        preferred_element_type=jnp.float32,
    )

    @pl.when(pl.program_id(2) == pl.num_programs(2) - 1)
    def _():
        o_ref[...] = acc_ref[...].astype(o_ref.dtype)


def qkv_linear(x, w, b, qk_dim, *, tm=512, tn=512, tk=1024):
    """x: (..., dim); w: (2*qk_dim + dim, dim) [PyTorch nn.Linear layout];
    b: (2*qk_dim + dim,).  Returns (q, kv) with q: (..., qk_dim),
    kv: (..., qk_dim + dim)."""
    orig_lead = x.shape[:-1]
    dim = x.shape[-1]
    out_dim = w.shape[0]
    M = math.prod(orig_lead) if orig_lead else 1

    x2 = x.reshape(M, dim)
    b2 = b.reshape(1, out_dim)

    # Tile selection: use the full extent when a dim fits under the cap
    # (no padding copy needed -- block == full array dim satisfies the
    # (8, 128) rule); otherwise use the (8,128)-aligned cap and pad only the
    # misaligned remainder.
    if M <= tm:
        tm_blk, Mp = M, M
    else:
        tm_blk, Mp = tm, _round_up(M, tm)
    if dim <= tk:
        tk_blk, Kp = dim, dim
    else:
        tk_blk, Kp = tk, _round_up(dim, tk)
    if out_dim <= tn:
        tn_blk, Np = out_dim, out_dim
    else:
        tn_blk, Np = tn, _round_up(out_dim, tn)

    x_p = x2 if (Mp == M and Kp == dim) else jnp.pad(
        x2, ((0, Mp - M), (0, Kp - dim)))
    w_p = w if (Np == out_dim and Kp == dim) else jnp.pad(
        w, ((0, Np - out_dim), (0, Kp - dim)))
    b_p = b2 if Np == out_dim else jnp.pad(b2, ((0, 0), (0, Np - out_dim)))

    gm, gn, gk = Mp // tm_blk, Np // tn_blk, Kp // tk_blk

    # Keep the leading (parallel) grid axis >= 2 blocks when possible so v7x's
    # two TensorCores both get work for small-M / decode shapes.
    n_first = (gm == 1 and gn > 1)
    if n_first:
        grid = (gn, gm, gk)
        x_map = lambda j, i, k: (i, k)
        w_map = lambda j, i, k: (j, k)
        b_map = lambda j, i, k: (0, j)
        o_map = lambda j, i, k: (i, j)
    else:
        grid = (gm, gn, gk)
        x_map = lambda i, j, k: (i, k)
        w_map = lambda i, j, k: (j, k)
        b_map = lambda i, j, k: (0, j)
        o_map = lambda i, j, k: (i, j)

    y_p = pl.pallas_call(
        _qkv_matmul_kernel,
        out_shape=jax.ShapeDtypeStruct((Mp, Np), x.dtype),
        grid_spec=pltpu.PrefetchScalarGridSpec(
            num_scalar_prefetch=0,
            grid=grid,
            in_specs=[
                pl.BlockSpec((tm_blk, tk_blk), x_map),
                pl.BlockSpec((tn_blk, tk_blk), w_map),   # native (out, in) layout
                pl.BlockSpec((1, tn_blk), b_map),
            ],
            out_specs=pl.BlockSpec((tm_blk, tn_blk), o_map),
            scratch_shapes=[pltpu.VMEM((tm_blk, tn_blk), jnp.float32)],
        ),
        compiler_params=pltpu.CompilerParams(
            dimension_semantics=("parallel", "parallel", "arbitrary"),
            vmem_limit_bytes=_vmem_limit_bytes(),
        ),
    )(x_p, w_p, b_p)

    y = y_p if (Mp == M and Np == out_dim) else y_p[:M, :out_dim]
    y = y.reshape(orig_lead + (out_dim,))

    # split([qk_dim, qk_dim + dim], dim=-1)
    # TODO(synk): emitting q / kv as two kernel outputs would save the
    # wrapper-side slice copies, but BlockSpec pipelining writes every output
    # block each grid step, so the fused y + slice is kept for correctness.
    q = y[..., :qk_dim]
    kv = y[..., qk_dim:]
    return q, kv


def qkv_linear_ref(x, w, b, qk_dim):
    # Pure-JAX reference mirroring the PyTorch forward.
    y = jnp.einsum("...d,od->...o", x, w) + b
    return y[..., :qk_dim], y[..., qk_dim:]


if __name__ == "__main__":
    key = jax.random.PRNGKey(0)
    k_x, k_w, k_b = jax.random.split(key, 3)

    batch, seq, dim, qk_dim = 2, 8, 32, 16
    out_dim = qk_dim + qk_dim + dim  # 64

    x = jax.random.normal(k_x, (batch, seq, dim), dtype=jnp.float32)
    # Deterministic synthetic nn.Linear(dim, 2*qk_dim + dim, bias=True) params.
    w = jax.random.normal(k_w, (out_dim, dim), dtype=jnp.float32) * (1.0 / math.sqrt(dim))
    b = jax.random.normal(k_b, (out_dim,), dtype=jnp.float32) * 0.1

    q, kv = qkv_linear(x, w, b, qk_dim)
    q = jax.block_until_ready(q)
    kv = jax.block_until_ready(kv)

    q_ref, kv_ref = qkv_linear_ref(x, w, b, qk_dim)
    assert q.shape == (batch, seq, qk_dim), q.shape
    assert kv.shape == (batch, seq, qk_dim + dim), kv.shape
    assert jnp.allclose(q, q_ref, atol=1e-5, rtol=1e-5), "q mismatch vs reference"
    assert jnp.allclose(kv, kv_ref, atol=1e-5, rtol=1e-5), "kv mismatch vs reference"

    print("KERNEL_OK")
</pallas_src>

<mosaic_0001>
module attributes {stable_mosaic.version = 11 : i64} {
  func.func @_qkv_matmul_kernel(%arg0: i32, %arg1: i32, %arg2: i32, %arg3: memref<16x32xf32, #tpu.memory_space<vmem>>, %arg4: memref<64x32xf32, #tpu.memory_space<vmem>>, %arg5: memref<1x64xf32, #tpu.memory_space<vmem>>, %arg6: memref<16x64xf32, #tpu.memory_space<vmem>>, %arg7: memref<16x64xf32, #tpu.memory_space<vmem>>) attributes {dimension_semantics = [#tpu.dimension_semantics<parallel>, #tpu.dimension_semantics<parallel>, #tpu.dimension_semantics<arbitrary>], iteration_bounds = array<i64: 1, 1, 1>, scalar_prefetch = 0 : i64, scratch_operands = 1 : i64, tpu.core_type = #tpu.core_type<tc>, window_params = [{transform_indices = @transform_0, window_bounds = array<i64: 16, 32>}, {transform_indices = @transform_1, window_bounds = array<i64: 64, 32>}, {transform_indices = @transform_2, window_bounds = array<i64: 1, 64>}, {transform_indices = @transform_3, window_bounds = array<i64: 16, 64>}]} {
    %c0_i32 = arith.constant 0 : i32
    %0 = arith.cmpi eq, %arg2, %c0_i32 : i32
    %1 = arith.extui %0 : i1 to i32
    %c0_i32_0 = arith.constant 0 : i32
    %2 = arith.cmpi ne, %1, %c0_i32_0 : i32
    scf.if %2 {
      %c0_10 = arith.constant 0 : index
      %c0_11 = arith.constant 0 : index
      %12 = vector.load %arg5[%c0_10, %c0_11] : memref<1x64xf32, #tpu.memory_space<vmem>>, vector<1x64xf32>
      %13 = vector.shape_cast %12 : vector<1x64xf32> to vector<1x64xf32>
      %14 = vector.broadcast %13 : vector<1x64xf32> to vector<16x64xf32>
      %c0_12 = arith.constant 0 : index
      %c0_13 = arith.constant 0 : index
      %15 = vector.load %arg7[%c0_12, %c0_13] : memref<16x64xf32, #tpu.memory_space<vmem>>, vector<16x64xf32>
      tpu.vector_store %arg7[%c0_12, %c0_13], %14 {strides = array<i32>} : memref<16x64xf32, #tpu.memory_space<vmem>>, vector<16x64xf32>,
    } else {
    }
    %c0 = arith.constant 0 : index
    %c0_1 = arith.constant 0 : index
    %3 = vector.load %arg7[%c0, %c0_1] : memref<16x64xf32, #tpu.memory_space<vmem>>, vector<16x64xf32>
    %c0_2 = arith.constant 0 : index
    %c0_3 = arith.constant 0 : index
    %4 = vector.load %arg3[%c0_2, %c0_3] : memref<16x32xf32, #tpu.memory_space<vmem>>, vector<16x32xf32>
    %c0_4 = arith.constant 0 : index
    %c0_5 = arith.constant 0 : index
    %5 = vector.load %arg4[%c0_4, %c0_5] : memref<64x32xf32, #tpu.memory_space<vmem>>, vector<64x32xf32>
    %cst = arith.constant dense<0.000000e+00> : vector<16x64xf32>
    %6 = tpu.matmul %4, %5, %cst {dimension_numbers = #tpu.dot_dimension_numbers<[1], [1], [0], [0], [0, 0, 1, 0], [], []>} : vector<16x32xf32>, vector<64x32xf32>, vector<16x64xf32> -> vector<16x64xf32>
    %7 = arith.addf %3, %6 : vector<16x64xf32>
    %c0_6 = arith.constant 0 : index
    %c0_7 = arith.constant 0 : index
    %8 = vector.load %arg7[%c0_6, %c0_7] : memref<16x64xf32, #tpu.memory_space<vmem>>, vector<16x64xf32>
    tpu.vector_store %arg7[%c0_6, %c0_7], %7 {strides = array<i32>} : memref<16x64xf32, #tpu.memory_space<vmem>>, vector<16x64xf32>,
    %c0_i32_8 = arith.constant 0 : i32
    %9 = arith.cmpi eq, %arg2, %c0_i32_8 : i32
    %10 = arith.extui %9 : i1 to i32
    %c0_i32_9 = arith.constant 0 : i32
    %11 = arith.cmpi ne, %10, %c0_i32_9 : i32
    scf.if %11 {
      %c0_10 = arith.constant 0 : index
      %c0_11 = arith.constant 0 : index
      %12 = vector.load %arg7[%c0_10, %c0_11] : memref<16x64xf32, #tpu.memory_space<vmem>>, vector<16x64xf32>
      %c0_12 = arith.constant 0 : index
      %c0_13 = arith.constant 0 : index
      %13 = vector.load %arg6[%c0_12, %c0_13] : memref<16x64xf32, #tpu.memory_space<vmem>>, vector<16x64xf32>
      tpu.vector_store %arg6[%c0_12, %c0_13], %12 {strides = array<i32>} : memref<16x64xf32, #tpu.memory_space<vmem>>, vector<16x64xf32>,
    } else {
    }
    return
  }
  func.func @transform_0(%arg0: i32, %arg1: i32, %arg2: i32) -> (i32, i32) {
    %c0_i32 = arith.constant 0 : i32
    return %arg0, %arg2 : i32, i32
  }
  func.func @transform_1(%arg0: i32, %arg1: i32, %arg2: i32) -> (i32, i32) {
    %c0_i32 = arith.constant 0 : i32
    return %arg1, %arg2 : i32, i32
  }
  func.func @transform_2(%arg0: i32, %arg1: i32, %arg2: i32) -> (i32, i32) {
    %c0_i32 = arith.constant 0 : i32
    %c0_i32_0 = arith.constant 0 : i32
    return %c0_i32, %arg1 : i32, i32
  }
  func.func @transform_3(%arg0: i32, %arg1: i32, %arg2: i32) -> (i32, i32) {
    %c0_i32 = arith.constant 0 : i32
    return %arg0, %arg1 : i32, i32
  }
}

</mosaic_0001>

<llo_original>
// kernel: tpu_custom_call.1
$region0: #{tpu_custom_call.1}
  #allocation0 [shape = 'u32[]', space=smem, size = 0x4, offset = 0x4, fixed_abs, tag = 'smem constant byte address 0x4 - core index']
  #allocation1 [shape = 'u32[144,128]{1,0:T(1,128)}', space=vmem, size = 0x12000, scoped, tag = 'internal scratch']
  #allocation2 [shape = 'f32[16,64]{1,0:T(8,128)}', space=vmem, size = 0x2000, scoped, tag = 'scratch operand']
  %s0 = inlined_call_operand.vmem [shape: f32[16,32], index: 0, kind: input, shape index: {}]
  %s1 = inlined_call_operand.vmem [shape: f32[64,32], index: 1, kind: input, shape index: {}]
  %s2 = inlined_call_operand.vmem [shape: f32[1,64], index: 2, kind: input, shape index: {}]
  %s3 = inlined_call_operand.hbm [shape: f32[16,64], index: 3, kind: output, shape index: {}]
  %s4 = sld [smem:[#allocation0]]
  $region30: #{tpu_custom_call.1} parent=0
    _
  %s6 = ssub.s32 1, %s4
  %s7 = scalar_select 0, %s6, %s4
  $region1: #{tpu_custom_call.1} parent=0
    #allocation3 [shape = 'u8[8192]{0}', space=vmem, size = 0x2000, scoped, tag = 'output window, operand 0, single buffered']
    #allocation4 [shape = 's32[1]{0}', space=sflag, size = 0x4, scoped, tag = 'scoped memory for tpu_custom_call.1']
    %8 = vsyncpa [#allocation4], 0
    // Predicated region
    $region2: #{tpu_custom_call.1} parent=1 // pred_check
      _
    $region3: #{tpu_custom_call.1} parent=1 // pred_check_branch
      %10 = sbr.rel (0) target = $region5
    $region4: #{tpu_custom_call.1} parent=1 // pred_region
      _
    $region5: #{tpu_custom_call.1} parent=1 // pred_fallthru
      _
    // Predicated region
    $region6: #{tpu_custom_call.1} parent=1 // pred_check
      _
    $region7: #{tpu_custom_call.1} parent=1 // pred_check_branch
      %12 = sbr.rel (0) target = $region9
    $region8: #{tpu_custom_call.1} parent=1 // pred_region
      _
    $region9: #{tpu_custom_call.1} parent=1 // pred_fallthru
      _
    // Predicated region
    $region10: #{tpu_custom_call.1} parent=1 // pred_check
      _
    $region11: #{tpu_custom_call.1} parent=1 // pred_check_branch
      %14 = sbr.rel (0) target = $region13
    $region12: #{tpu_custom_call.1} parent=1 // pred_region
      _
    $region13: #{tpu_custom_call.1} parent=1 // pred_fallthru
      _
    %p15 = scmp.eq.s32.totalorder 0, 0
    // Predicated region
    $region14: #{tpu_custom_call.1} parent=1 // pred_check
      %p16 = pneg %p15
    $region15: #{tpu_custom_call.1} parent=1 // pred_check_branch
      %18 = sbr.rel (%p16) target = $region17
    $region16: #{tpu_custom_call.1} parent=1 // pred_region
      %v19 = vld [vmem:[%s2] sm:$0x1]
      %v21 = vlaneseq
      %v22 = vshrl.u32 %v21, 7
      %v23 = vsub.s32 0, %v22
      %v24 = vrot.slane %v19, %v23
      %vm26 = vcmask 523264
      %27 = vst.msk [vmem:[#allocation2] sm:$0xff] %vm26, %v24
      %28 = vst.msk [vmem:[#allocation2 + $0x8] sm:$0xff] %vm26, %v24
    $region17: #{tpu_custom_call.1} parent=1 // pred_fallthru
      _
    %v29 = vld [vmem:[#allocation2] sm:$0xff]
    %v30 = vld [vmem:[#allocation2 + $0x8] sm:$0xff]
    %v31 = vld [vmem:[%s0] sm:$0xff]
    %v32 = vld [vmem:[%s0 + $0x8] sm:$0xff]
    %v33 = vld [vmem:[%s1] sm:$0xff]
    %v34 = vld [vmem:[%s1 + $0x8] sm:$0xff]
    %v35 = vld [vmem:[%s1 + $0x10] sm:$0xff]
    %v36 = vld [vmem:[%s1 + $0x18] sm:$0xff]
    %v37 = vld [vmem:[%s1 + $0x20] sm:$0xff]
    %v38 = vld [vmem:[%s1 + $0x28] sm:$0xff]
    %v39 = vld [vmem:[%s1 + $0x30] sm:$0xff]
    %v40 = vld [vmem:[%s1 + $0x38] sm:$0xff]
    %vm41 = vcmask 261120
    %v43 = vsel %vm41, %v31, 0
    %v46 = vsel %vm41, %v32, 0
    %v49 = vsel %vm41, %v33, 0
    %v52 = vsel %vm41, %v34, 0
    %v55 = vsel %vm41, %v35, 0
    %v58 = vsel %vm41, %v36, 0
    %v61 = vsel %vm41, %v37, 0
    %v64 = vsel %vm41, %v38, 0
    %v67 = vsel %vm41, %v39, 0
    %v70 = vsel %vm41, %v40, 0
    %72 = vmatprep.subr.mxu0 0.0
    %73 = vmatpush1.xpose.msra.mxu0 0.0
    %74 = vmatprep.subr.mxu0 0.0
    %75 = vmatpush1.xpose.msra.mxu0 0.0
    %76 = vmatprep.subr.mxu0 0.0
    %77 = vmatpush1.xpose.msra.mxu0 0.0
    %78 = vmatprep.subr.mxu0 0.0
    %79 = vmatpush1.xpose.msra.mxu0 0.0
    %80 = vmatprep.subr.mxu0 0.0
    %81 = vmatpush1.xpose.msra.mxu0 0.0
    %82 = vmatprep.subr.mxu0 0.0
    %83 = vmatpush1.xpose.msra.mxu0 0.0
    %84 = vmatprep.subr.mxu0 0.0
    %85 = vmatpush1.xpose.msra.mxu0 0.0
    %86 = vmatprep.subr.mxu0 0.0
    %87 = vmatpush1.xpose.msra.mxu0 0.0
    %88 = vmatprep.subr.mxu0 0.0
    %89 = vmatpush1.xpose.msra.mxu0 %v70
    %90 = vmatprep.subr.mxu0 0.0
    %91 = vmatpush1.xpose.msra.mxu0 %v67
    %92 = vmatprep.subr.mxu0 0.0
    %93 = vmatpush1.xpose.msra.mxu0 %v64
    %94 = vmatprep.subr.mxu0 0.0
    %95 = vmatpush1.xpose.msra.mxu0 %v61
    %96 = vmatprep.subr.mxu0 0.0
    %97 = vmatpush1.xpose.msra.mxu0 %v58
    %98 = vmatprep.subr.mxu0 0.0
    %99 = vmatpush1.xpose.msra.mxu0 %v55
    %100 = vmatprep.subr.mxu0 0.0
    %101 = vmatpush1.xpose.msra.mxu0 %v52
    %102 = vmatprep.subr.mxu0 0.0
    %103 = vmatpush1.xpose.msra.mxu0 %v49
    %104 = vmatprep.subr.mxu0 0.0
    %105 = vmatpush2.xpose.msra.mxu0 0.0
    %106 = vmatprep.subr.mxu0 0.0
    %107 = vmatpush2.xpose.msra.mxu0 0.0
    %108 = vmatprep.subr.mxu0 0.0
    %109 = vmatpush2.xpose.msra.mxu0 0.0
    %110 = vmatprep.subr.mxu0 0.0
    %111 = vmatpush2.xpose.msra.mxu0 0.0
    %112 = vmatprep.subr.mxu0 0.0
    %113 = vmatpush2.xpose.msra.mxu0 0.0
    %114 = vmatprep.subr.mxu0 0.0
    %115 = vmatpush2.xpose.msra.mxu0 0.0
    %116 = vmatprep.subr.mxu0 0.0
    %117 = vmatpush2.xpose.msra.mxu0 0.0
    %118 = vmatprep.subr.mxu0 0.0
    %119 = vmatpush2.xpose.msra.mxu0 0.0
    %120 = vmatprep.subr.mxu0 0.0
    %121 = vmatpush2.xpose.msra.mxu0 0.0
    %122 = vmatprep.subr.mxu0 0.0
    %123 = vmatpush2.xpose.msra.mxu0 0.0
    %124 = vmatprep.subr.mxu0 0.0
    %125 = vmatpush2.xpose.msra.mxu0 0.0
    %126 = vmatprep.subr.mxu0 0.0
    %127 = vmatpush2.xpose.msra.mxu0 0.0
    %128 = vmatprep.subr.mxu0 0.0
    %129 = vmatpush2.xpose.msra.mxu0 0.0
    %130 = vmatprep.subr.mxu0 0.0
    %131 = vmatpush2.xpose.msra.mxu0 0.0
    %132 = vmatprep.subr.mxu0 0.0
    %133 = vmatpush2.xpose.msra.mxu0 0.0
    %134 = vmatprep.subr.mxu0 0.0
    %135 = vmatpush2.xpose.msra.mxu0 0.0
    %136 = vmatprep.mubr.f32.mxu0 0.0
    %137 = vmatmul.mubr.f32.gmra.mxu0 %v43
    %v138 = vpop.f32.mrf.mxu0
    %v139 = vadd.f32 0.0, %v138
    %v140 = vpop.f32.mrf.mxu0
    %141 = vmatprep.mubr.f32.mxu0 0.0
    %142 = vmatmul.mubr.f32.gmra.mxu0 %v46
    %v143 = vpop.f32.mrf.mxu0
    %v144 = vadd.f32 0.0, %v143
    %v145 = vpop.f32.mrf.mxu0
    %146 = vdwg.mxu0
    %v147 = vadd.f32 %v29, %v139
    %v148 = vadd.f32 %v30, %v144
    %vm149 = vcmask 523264
    %150 = vst.msk [vmem:[#allocation2] sm:$0xff] %vm149, %v147
    %151 = vst.msk [vmem:[#allocation2 + $0x8] sm:$0xff] %vm149, %v148
    // Predicated region
    $region18: #{tpu_custom_call.1} parent=1 // pred_check
      %p152 = pneg %p15
    $region19: #{tpu_custom_call.1} parent=1 // pred_check_branch
      %154 = sbr.rel (%p152) target = $region21
    $region20: #{tpu_custom_call.1} parent=1 // pred_region
      %v155 = vld [vmem:[#allocation2] sm:$0xff]
      %v156 = vld [vmem:[#allocation2 + $0x8] sm:$0xff]
      %157 = vst.msk [vmem:[#allocation3] sm:$0xff] %vm149, %v155
      %158 = vst.msk [vmem:[#allocation3 + $0x8] sm:$0xff] %vm149, %v156
    $region21: #{tpu_custom_call.1} parent=1 // pred_fallthru
      _
    // Predicated region
    $region22: #{tpu_custom_call.1} parent=1 // pred_check
      _
    $region23: #{tpu_custom_call.1} parent=1 // pred_check_branch
      %160 = sbr.rel (0) target = $region25
    $region24: #{tpu_custom_call.1} parent=1 // pred_region
      %s162 = ssub.s32 256, 256
      %163 = vsyncadd [#allocation4], %s162
      %s164 = sshll.u32 [#allocation3], 4
      %s165 = int_to_ptr.vmem [resolvable:$true] %s164
      %170 = dma.vmem_to_hbm [thread:$0]  %s165, 256, %s3, [#allocation4], 128, 128, 8
    $region25: #{tpu_custom_call.1} parent=1 // pred_fallthru
      _
    // Predicated region
    $region26: #{tpu_custom_call.1} parent=1 // pred_check
      _
    $region27: #{tpu_custom_call.1} parent=1 // pred_check_branch
      %172 = sbr.rel (0) target = $region29
    $region28: #{tpu_custom_call.1} parent=1 // pred_region
      %173 = dma.done [#allocation4], 256
    $region29: #{tpu_custom_call.1} parent=1 // pred_fallthru
      _
    %174 = vsyncpa [#allocation4], 1

</llo_original>
